<compile_context>
chip_gen: v7x
topology: tpu7x:2x2x1
jax: 0.10.0
libtpu: 0.0.40
codegen_flags: <defaults>
</compile_context>

<pallas_src>
import functools

import jax
import jax.numpy as jnp
from jax.experimental import pallas as pl
from jax.experimental.pallas import tpu as pltpu


def _sbunit_lstm_kernel(x_ref, wih_ref, whh_ref, b_ref, out_ref,
                        *, seq_len, batch, in_dim, hidden, weight):
    """Single-invocation LSTM + fused concat.

    x_ref   : (S*B, D)      time-major input, flattened over (seq, batch)
    wih_ref : (D, 4H)       fused input weights  (W_ih^T, gate order i,f,g,o)
    whh_ref : (H, 4H)       fused recurrent weights (W_hh^T)
    b_ref   : (1, 4H)       fused bias (b_ih + b_hh)
    out_ref : (S*B, D + H)  output slab: [:, :D] = x, [:, D:] = weight * h_t
    """
    S, B, D, H = seq_len, batch, in_dim, hidden

    x = x_ref[...]                       # (S*B, D), resident in VMEM/vregs

    # --- fused concat, part 1: copy the input slab once ----------------------
    out_ref[:, 0:D] = x

    # --- hoisted input projection: the only throughput-bound matmul ----------
    # (S*B, D) x (D, 4H), bias folded in.  Stays resident as a value; per-step
    # gate rows are static slices, off the serial dependence chain.
    gx = jnp.dot(x, wih_ref[...], preferred_element_type=jnp.float32) + b_ref[...]

    w_hh = whh_ref[...]                  # (H, 4H), loaded once, stays resident

    h = jnp.zeros((B, H), jnp.float32)
    c = jnp.zeros((B, H), jnp.float32)

    h_steps = []
    # Static unroll over time: the recurrence is inherently serial; only the
    # single fused (B,H)x(H,4H) matmul sits on the dependence chain.
    for t in range(S):
        g = gx[t * B:(t + 1) * B, :] + jnp.dot(
            h, w_hh, preferred_element_type=jnp.float32)        # (B, 4H)

        sg = jax.nn.sigmoid(g)           # one EUP pass over all 4H lanes
        tg = jnp.tanh(g)                 # one EUP pass over all 4H lanes

        i_t = sg[:, 0 * H:1 * H]
        f_t = sg[:, 1 * H:2 * H]
        g_t = tg[:, 2 * H:3 * H]
        o_t = sg[:, 3 * H:4 * H]

        c = f_t * c + i_t * g_t
        h = o_t * jnp.tanh(c)
        h_steps.append(h)

    hs = jnp.concatenate(h_steps, axis=0)                        # (S*B, H)
    if weight != 1.0:                    # compile-time branch; elided at 1.0
        hs = weight * hs

    # --- fused concat, part 2: ONE store of all hidden states ----------------
    out_ref[:, D:D + H] = hs.astype(out_ref.dtype)


def prepare_sbunit_params(w_ih, w_hh, b_ih, b_hh):
    """Fuse PyTorch LSTM params once (do this at parameter-prep time).

    w_ih: (4H, D), w_hh: (4H, H), b_ih/b_hh: (4H,)
    returns wih_f (D, 4H), whh_f (H, 4H), bias_f (1, 4H) in float32.
    PyTorch row blocks [i; f; g; o] become lane blocks [i | f | g | o].
    """
    f32 = jnp.float32
    wih_f = jnp.transpose(w_ih).astype(f32)           # (D, 4H)
    whh_f = jnp.transpose(w_hh).astype(f32)           # (H, 4H)
    bias_f = (b_ih + b_hh).astype(f32).reshape(1, -1)  # (1, 4H)
    return wih_f, whh_f, bias_f


def sb_unit_forward_prepared(x, wih_f, whh_f, bias_f, weight=1.0):
    """SBUnit.forward with unit='lstm', droprate=0 (eval), scalar `weight`,
    taking pre-fused parameters from prepare_sbunit_params.

    x: (seq_len, batch, input_dim) float32
    returns: (seq_len, batch, input_dim + hidden)

    Note: `weight` is baked into the kernel at trace time (changing it
    recompiles); the module's default (weight=1) elides the multiply.
    """
    S, B, D = x.shape
    H = whh_f.shape[0]

    x2d = x.reshape(S * B, D)            # contiguous -> free reshape

    kernel = functools.partial(
        _sbunit_lstm_kernel,
        seq_len=S, batch=B, in_dim=D, hidden=H, weight=float(weight))

    out2d = pl.pallas_call(
        kernel,
        out_shape=jax.ShapeDtypeStruct((S * B, D + H), x.dtype),
        in_specs=[
            pl.BlockSpec(memory_space=pltpu.MemorySpace.VMEM),  # x2d
            pl.BlockSpec(memory_space=pltpu.MemorySpace.VMEM),  # W_ih^T fused
            pl.BlockSpec(memory_space=pltpu.MemorySpace.VMEM),  # W_hh^T fused
            pl.BlockSpec(memory_space=pltpu.MemorySpace.VMEM),  # fused bias
        ],
        out_specs=pl.BlockSpec(memory_space=pltpu.MemorySpace.VMEM),
        compiler_params=pltpu.CompilerParams(
            # Whole-array VMEM residency; tiny at module shapes. 32 MiB is
            # within the physical/scoped budget on v5e/v6e/v7x.
            vmem_limit_bytes=32 * 1024 * 1024,
        ),
    )(x2d, wih_f, whh_f, bias_f)

    return out2d.reshape(S, B, D + H)


def sb_unit_forward(x, w_ih, w_hh, b_ih, b_hh, weight=1.0):
    """Convenience wrapper taking raw PyTorch-shaped LSTM params."""
    wih_f, whh_f, bias_f = prepare_sbunit_params(w_ih, w_hh, b_ih, b_hh)
    return sb_unit_forward_prepared(x, wih_f, whh_f, bias_f, weight=weight)


def _lstm_reference(x, w_ih, w_hh, b_ih, b_hh):
    """Pure-JAX reference of a single-layer PyTorch LSTM (zero init state)."""
    S, B, D = x.shape
    H = w_hh.shape[1]
    h = jnp.zeros((B, H), jnp.float32)
    c = jnp.zeros((B, H), jnp.float32)
    outs = []
    for t in range(S):
        g = x[t] @ w_ih.T + h @ w_hh.T + b_ih + b_hh
        i = jax.nn.sigmoid(g[:, 0 * H:1 * H])
        f = jax.nn.sigmoid(g[:, 1 * H:2 * H])
        gg = jnp.tanh(g[:, 2 * H:3 * H])
        o = jax.nn.sigmoid(g[:, 3 * H:4 * H])
        c = f * c + i * gg
        h = o * jnp.tanh(c)
        outs.append(h)
    return jnp.stack(outs, axis=0)


if __name__ == "__main__":
    # Shapes consistent with SBUnit(unit='lstm', input_dim=32, increase_rate=32,
    # droprate=0.0): x is (seq_len=8, batch=2, input_dim=32).
    S, B, D, H = 8, 2, 32, 32

    key = jax.random.PRNGKey(0)
    kx, k1, k2, k3, k4 = jax.random.split(key, 5)

    x = jax.random.normal(kx, (S, B, D), dtype=jnp.float32)

    # PyTorch LSTM default init: U(-1/sqrt(H), 1/sqrt(H)).
    bound = 1.0 / (H ** 0.5)
    w_ih = jax.random.uniform(k1, (4 * H, D), jnp.float32, -bound, bound)
    w_hh = jax.random.uniform(k2, (4 * H, H), jnp.float32, -bound, bound)
    b_ih = jax.random.uniform(k3, (4 * H,), jnp.float32, -bound, bound)
    b_hh = jax.random.uniform(k4, (4 * H,), jnp.float32, -bound, bound)

    lstm_ref = _lstm_reference(x, w_ih, w_hh, b_ih, b_hh)

    # Prepare fused params once (hoisted out of the per-call hot path).
    wih_f, whh_f, bias_f = prepare_sbunit_params(w_ih, w_hh, b_ih, b_hh)

    # Default weight=1 (multiply elided in-kernel).
    out = jax.block_until_ready(
        sb_unit_forward_prepared(x, wih_f, whh_f, bias_f, weight=1.0))
    assert out.shape == (S, B, D + H), out.shape
    ref = jnp.concatenate([x, lstm_ref], axis=2)
    assert jnp.allclose(out, ref, atol=1e-5, rtol=1e-5), \
        float(jnp.max(jnp.abs(out - ref)))

    # Non-trivial selection weight exercises the scaled path.
    out_w = jax.block_until_ready(
        sb_unit_forward_prepared(x, wih_f, whh_f, bias_f, weight=0.5))
    ref_w = jnp.concatenate([x, 0.5 * lstm_ref], axis=2)
    assert jnp.allclose(out_w, ref_w, atol=1e-5, rtol=1e-5), \
        float(jnp.max(jnp.abs(out_w - ref_w)))

    print("KERNEL_OK")
</pallas_src>

<mosaic_0001>
module attributes {stable_mosaic.version = 11 : i64} {
  func.func @_sbunit_lstm_kernel(%arg0: memref<16x32xf32, #tpu.memory_space<vmem>>, %arg1: memref<32x128xf32, #tpu.memory_space<vmem>>, %arg2: memref<32x128xf32, #tpu.memory_space<vmem>>, %arg3: memref<1x128xf32, #tpu.memory_space<vmem>>, %arg4: memref<16x64xf32, #tpu.memory_space<vmem>>) attributes {dimension_semantics = [], scalar_prefetch = 0 : i64, scratch_operands = 0 : i64, tpu.core_type = #tpu.core_type<tc>} {
    %c0 = arith.constant 0 : index
    %c0_0 = arith.constant 0 : index
    %0 = vector.load %arg0[%c0, %c0_0] : memref<16x32xf32, #tpu.memory_space<vmem>>, vector<16x32xf32>
    %c0_1 = arith.constant 0 : index
    %c0_2 = arith.constant 0 : index
    %1 = vector.load %arg4[%c0_1, %c0_2] : memref<16x64xf32, #tpu.memory_space<vmem>>, vector<16x32xf32>
    tpu.vector_store %arg4[%c0_1, %c0_2], %0 {strides = array<i32>} : memref<16x64xf32, #tpu.memory_space<vmem>>, vector<16x32xf32>,
    %c0_3 = arith.constant 0 : index
    %c0_4 = arith.constant 0 : index
    %2 = vector.load %arg1[%c0_3, %c0_4] : memref<32x128xf32, #tpu.memory_space<vmem>>, vector<32x128xf32>
    %cst = arith.constant dense<0.000000e+00> : vector<16x128xf32>
    %3 = tpu.matmul %0, %2, %cst {dimension_numbers = #tpu.dot_dimension_numbers<[1], [0], [0], [1], [0, 0, 1, 1], [], []>} : vector<16x32xf32>, vector<32x128xf32>, vector<16x128xf32> -> vector<16x128xf32>
    %c0_5 = arith.constant 0 : index
    %c0_6 = arith.constant 0 : index
    %4 = vector.load %arg3[%c0_5, %c0_6] : memref<1x128xf32, #tpu.memory_space<vmem>>, vector<1x128xf32>
    %5 = vector.broadcast %4 : vector<1x128xf32> to vector<16x128xf32>
    %6 = arith.addf %3, %5 : vector<16x128xf32>
    %c0_7 = arith.constant 0 : index
    %c0_8 = arith.constant 0 : index
    %7 = vector.load %arg2[%c0_7, %c0_8] : memref<32x128xf32, #tpu.memory_space<vmem>>, vector<32x128xf32>
    %cst_9 = arith.constant 0.000000e+00 : f32
    %8 = vector.broadcast %cst_9 : f32 to vector<2x32xf32>
    %cst_10 = arith.constant 0.000000e+00 : f32
    %9 = vector.broadcast %cst_10 : f32 to vector<2x32xf32>
    %10 = vector.extract_strided_slice %6 {offsets = [0, 0], sizes = [2, 128], strides = [1, 1]} : vector<16x128xf32> to vector<2x128xf32>
    %cst_11 = arith.constant dense<0.000000e+00> : vector<2x128xf32>
    %11 = tpu.matmul %8, %7, %cst_11 {dimension_numbers = #tpu.dot_dimension_numbers<[1], [0], [0], [1], [0, 0, 1, 1], [], []>} : vector<2x32xf32>, vector<32x128xf32>, vector<2x128xf32> -> vector<2x128xf32>
    %12 = arith.addf %10, %11 : vector<2x128xf32>
    %13 = arith.negf %12 : vector<2x128xf32>
    %14 = math.exp %13 : vector<2x128xf32>
    %cst_12 = arith.constant 1.000000e+00 : f32
    %15 = vector.broadcast %cst_12 : f32 to vector<2x128xf32>
    %16 = arith.addf %15, %14 : vector<2x128xf32>
    %17 = arith.divf %15, %16 : vector<2x128xf32>
    %18 = math.tanh %12 : vector<2x128xf32>
    %19 = vector.extract_strided_slice %17 {offsets = [0, 0], sizes = [2, 32], strides = [1, 1]} : vector<2x128xf32> to vector<2x32xf32>
    %20 = vector.extract_strided_slice %17 {offsets = [0, 32], sizes = [2, 32], strides = [1, 1]} : vector<2x128xf32> to vector<2x32xf32>
    %21 = vector.extract_strided_slice %18 {offsets = [0, 64], sizes = [2, 32], strides = [1, 1]} : vector<2x128xf32> to vector<2x32xf32>
    %22 = vector.extract_strided_slice %17 {offsets = [0, 96], sizes = [2, 32], strides = [1, 1]} : vector<2x128xf32> to vector<2x32xf32>
    %23 = arith.mulf %20, %9 : vector<2x32xf32>
    %24 = arith.mulf %19, %21 : vector<2x32xf32>
    %25 = arith.addf %23, %24 : vector<2x32xf32>
    %26 = math.tanh %25 : vector<2x32xf32>
    %27 = arith.mulf %22, %26 : vector<2x32xf32>
    %28 = vector.extract_strided_slice %6 {offsets = [2, 0], sizes = [2, 128], strides = [1, 1]} : vector<16x128xf32> to vector<2x128xf32>
    %cst_13 = arith.constant dense<0.000000e+00> : vector<2x128xf32>
    %29 = tpu.matmul %27, %7, %cst_13 {dimension_numbers = #tpu.dot_dimension_numbers<[1], [0], [0], [1], [0, 0, 1, 1], [], []>} : vector<2x32xf32>, vector<32x128xf32>, vector<2x128xf32> -> vector<2x128xf32>
    %30 = arith.addf %28, %29 : vector<2x128xf32>
    %31 = arith.negf %30 : vector<2x128xf32>
    %32 = math.exp %31 : vector<2x128xf32>
    %cst_14 = arith.constant 1.000000e+00 : f32
    %33 = vector.broadcast %cst_14 : f32 to vector<2x128xf32>
    %34 = arith.addf %33, %32 : vector<2x128xf32>
    %35 = arith.divf %33, %34 : vector<2x128xf32>
    %36 = math.tanh %30 : vector<2x128xf32>
    %37 = vector.extract_strided_slice %35 {offsets = [0, 0], sizes = [2, 32], strides = [1, 1]} : vector<2x128xf32> to vector<2x32xf32>
    %38 = vector.extract_strided_slice %35 {offsets = [0, 32], sizes = [2, 32], strides = [1, 1]} : vector<2x128xf32> to vector<2x32xf32>
    %39 = vector.extract_strided_slice %36 {offsets = [0, 64], sizes = [2, 32], strides = [1, 1]} : vector<2x128xf32> to vector<2x32xf32>
    %40 = vector.extract_strided_slice %35 {offsets = [0, 96], sizes = [2, 32], strides = [1, 1]} : vector<2x128xf32> to vector<2x32xf32>
    %41 = arith.mulf %38, %25 : vector<2x32xf32>
    %42 = arith.mulf %37, %39 : vector<2x32xf32>
    %43 = arith.addf %41, %42 : vector<2x32xf32>
    %44 = math.tanh %43 : vector<2x32xf32>
    %45 = arith.mulf %40, %44 : vector<2x32xf32>
    %46 = vector.extract_strided_slice %6 {offsets = [4, 0], sizes = [2, 128], strides = [1, 1]} : vector<16x128xf32> to vector<2x128xf32>
    %cst_15 = arith.constant dense<0.000000e+00> : vector<2x128xf32>
    %47 = tpu.matmul %45, %7, %cst_15 {dimension_numbers = #tpu.dot_dimension_numbers<[1], [0], [0], [1], [0, 0, 1, 1], [], []>} : vector<2x32xf32>, vector<32x128xf32>, vector<2x128xf32> -> vector<2x128xf32>
    %48 = arith.addf %46, %47 : vector<2x128xf32>
    %49 = arith.negf %48 : vector<2x128xf32>
    %50 = math.exp %49 : vector<2x128xf32>
    %cst_16 = arith.constant 1.000000e+00 : f32
    %51 = vector.broadcast %cst_16 : f32 to vector<2x128xf32>
    %52 = arith.addf %51, %50 : vector<2x128xf32>
    %53 = arith.divf %51, %52 : vector<2x128xf32>
    %54 = math.tanh %48 : vector<2x128xf32>
    %55 = vector.extract_strided_slice %53 {offsets = [0, 0], sizes = [2, 32], strides = [1, 1]} : vector<2x128xf32> to vector<2x32xf32>
    %56 = vector.extract_strided_slice %53 {offsets = [0, 32], sizes = [2, 32], strides = [1, 1]} : vector<2x128xf32> to vector<2x32xf32>
    %57 = vector.extract_strided_slice %54 {offsets = [0, 64], sizes = [2, 32], strides = [1, 1]} : vector<2x128xf32> to vector<2x32xf32>
    %58 = vector.extract_strided_slice %53 {offsets = [0, 96], sizes = [2, 32], strides = [1, 1]} : vector<2x128xf32> to vector<2x32xf32>
    %59 = arith.mulf %56, %43 : vector<2x32xf32>
    %60 = arith.mulf %55, %57 : vector<2x32xf32>
    %61 = arith.addf %59, %60 : vector<2x32xf32>
    %62 = math.tanh %61 : vector<2x32xf32>
    %63 = arith.mulf %58, %62 : vector<2x32xf32>
    %64 = vector.extract_strided_slice %6 {offsets = [6, 0], sizes = [2, 128], strides = [1, 1]} : vector<16x128xf32> to vector<2x128xf32>
    %cst_17 = arith.constant dense<0.000000e+00> : vector<2x128xf32>
    %65 = tpu.matmul %63, %7, %cst_17 {dimension_numbers = #tpu.dot_dimension_numbers<[1], [0], [0], [1], [0, 0, 1, 1], [], []>} : vector<2x32xf32>, vector<32x128xf32>, vector<2x128xf32> -> vector<2x128xf32>
    %66 = arith.addf %64, %65 : vector<2x128xf32>
    %67 = arith.negf %66 : vector<2x128xf32>
    %68 = math.exp %67 : vector<2x128xf32>
    %cst_18 = arith.constant 1.000000e+00 : f32
    %69 = vector.broadcast %cst_18 : f32 to vector<2x128xf32>
    %70 = arith.addf %69, %68 : vector<2x128xf32>
    %71 = arith.divf %69, %70 : vector<2x128xf32>
    %72 = math.tanh %66 : vector<2x128xf32>
    %73 = vector.extract_strided_slice %71 {offsets = [0, 0], sizes = [2, 32], strides = [1, 1]} : vector<2x128xf32> to vector<2x32xf32>
    %74 = vector.extract_strided_slice %71 {offsets = [0, 32], sizes = [2, 32], strides = [1, 1]} : vector<2x128xf32> to vector<2x32xf32>
    %75 = vector.extract_strided_slice %72 {offsets = [0, 64], sizes = [2, 32], strides = [1, 1]} : vector<2x128xf32> to vector<2x32xf32>
    %76 = vector.extract_strided_slice %71 {offsets = [0, 96], sizes = [2, 32], strides = [1, 1]} : vector<2x128xf32> to vector<2x32xf32>
    %77 = arith.mulf %74, %61 : vector<2x32xf32>
    %78 = arith.mulf %73, %75 : vector<2x32xf32>
    %79 = arith.addf %77, %78 : vector<2x32xf32>
    %80 = math.tanh %79 : vector<2x32xf32>
    %81 = arith.mulf %76, %80 : vector<2x32xf32>
    %82 = vector.extract_strided_slice %6 {offsets = [8, 0], sizes = [2, 128], strides = [1, 1]} : vector<16x128xf32> to vector<2x128xf32>
    %cst_19 = arith.constant dense<0.000000e+00> : vector<2x128xf32>
    %83 = tpu.matmul %81, %7, %cst_19 {dimension_numbers = #tpu.dot_dimension_numbers<[1], [0], [0], [1], [0, 0, 1, 1], [], []>} : vector<2x32xf32>, vector<32x128xf32>, vector<2x128xf32> -> vector<2x128xf32>
    %84 = arith.addf %82, %83 : vector<2x128xf32>
    %85 = arith.negf %84 : vector<2x128xf32>
    %86 = math.exp %85 : vector<2x128xf32>
    %cst_20 = arith.constant 1.000000e+00 : f32
    %87 = vector.broadcast %cst_20 : f32 to vector<2x128xf32>
    %88 = arith.addf %87, %86 : vector<2x128xf32>
    %89 = arith.divf %87, %88 : vector<2x128xf32>
    %90 = math.tanh %84 : vector<2x128xf32>
    %91 = vector.extract_strided_slice %89 {offsets = [0, 0], sizes = [2, 32], strides = [1, 1]} : vector<2x128xf32> to vector<2x32xf32>
    %92 = vector.extract_strided_slice %89 {offsets = [0, 32], sizes = [2, 32], strides = [1, 1]} : vector<2x128xf32> to vector<2x32xf32>
    %93 = vector.extract_strided_slice %90 {offsets = [0, 64], sizes = [2, 32], strides = [1, 1]} : vector<2x128xf32> to vector<2x32xf32>
    %94 = vector.extract_strided_slice %89 {offsets = [0, 96], sizes = [2, 32], strides = [1, 1]} : vector<2x128xf32> to vector<2x32xf32>
    %95 = arith.mulf %92, %79 : vector<2x32xf32>
    %96 = arith.mulf %91, %93 : vector<2x32xf32>
    %97 = arith.addf %95, %96 : vector<2x32xf32>
    %98 = math.tanh %97 : vector<2x32xf32>
    %99 = arith.mulf %94, %98 : vector<2x32xf32>
    %100 = vector.extract_strided_slice %6 {offsets = [10, 0], sizes = [2, 128], strides = [1, 1]} : vector<16x128xf32> to vector<2x128xf32>
    %cst_21 = arith.constant dense<0.000000e+00> : vector<2x128xf32>
    %101 = tpu.matmul %99, %7, %cst_21 {dimension_numbers = #tpu.dot_dimension_numbers<[1], [0], [0], [1], [0, 0, 1, 1], [], []>} : vector<2x32xf32>, vector<32x128xf32>, vector<2x128xf32> -> vector<2x128xf32>
    %102 = arith.addf %100, %101 : vector<2x128xf32>
    %103 = arith.negf %102 : vector<2x128xf32>
    %104 = math.exp %103 : vector<2x128xf32>
    %cst_22 = arith.constant 1.000000e+00 : f32
    %105 = vector.broadcast %cst_22 : f32 to vector<2x128xf32>
    %106 = arith.addf %105, %104 : vector<2x128xf32>
    %107 = arith.divf %105, %106 : vector<2x128xf32>
    %108 = math.tanh %102 : vector<2x128xf32>
    %109 = vector.extract_strided_slice %107 {offsets = [0, 0], sizes = [2, 32], strides = [1, 1]} : vector<2x128xf32> to vector<2x32xf32>
    %110 = vector.extract_strided_slice %107 {offsets = [0, 32], sizes = [2, 32], strides = [1, 1]} : vector<2x128xf32> to vector<2x32xf32>
    %111 = vector.extract_strided_slice %108 {offsets = [0, 64], sizes = [2, 32], strides = [1, 1]} : vector<2x128xf32> to vector<2x32xf32>
    %112 = vector.extract_strided_slice %107 {offsets = [0, 96], sizes = [2, 32], strides = [1, 1]} : vector<2x128xf32> to vector<2x32xf32>
    %113 = arith.mulf %110, %97 : vector<2x32xf32>
    %114 = arith.mulf %109, %111 : vector<2x32xf32>
    %115 = arith.addf %113, %114 : vector<2x32xf32>
    %116 = math.tanh %115 : vector<2x32xf32>
    %117 = arith.mulf %112, %116 : vector<2x32xf32>
    %118 = vector.extract_strided_slice %6 {offsets = [12, 0], sizes = [2, 128], strides = [1, 1]} : vector<16x128xf32> to vector<2x128xf32>
    %cst_23 = arith.constant dense<0.000000e+00> : vector<2x128xf32>
    %119 = tpu.matmul %117, %7, %cst_23 {dimension_numbers = #tpu.dot_dimension_numbers<[1], [0], [0], [1], [0, 0, 1, 1], [], []>} : vector<2x32xf32>, vector<32x128xf32>, vector<2x128xf32> -> vector<2x128xf32>
    %120 = arith.addf %118, %119 : vector<2x128xf32>
    %121 = arith.negf %120 : vector<2x128xf32>
    %122 = math.exp %121 : vector<2x128xf32>
    %cst_24 = arith.constant 1.000000e+00 : f32
    %123 = vector.broadcast %cst_24 : f32 to vector<2x128xf32>
    %124 = arith.addf %123, %122 : vector<2x128xf32>
    %125 = arith.divf %123, %124 : vector<2x128xf32>
    %126 = math.tanh %120 : vector<2x128xf32>
    %127 = vector.extract_strided_slice %125 {offsets = [0, 0], sizes = [2, 32], strides = [1, 1]} : vector<2x128xf32> to vector<2x32xf32>
    %128 = vector.extract_strided_slice %125 {offsets = [0, 32], sizes = [2, 32], strides = [1, 1]} : vector<2x128xf32> to vector<2x32xf32>
    %129 = vector.extract_strided_slice %126 {offsets = [0, 64], sizes = [2, 32], strides = [1, 1]} : vector<2x128xf32> to vector<2x32xf32>
    %130 = vector.extract_strided_slice %125 {offsets = [0, 96], sizes = [2, 32], strides = [1, 1]} : vector<2x128xf32> to vector<2x32xf32>
    %131 = arith.mulf %128, %115 : vector<2x32xf32>
    %132 = arith.mulf %127, %129 : vector<2x32xf32>
    %133 = arith.addf %131, %132 : vector<2x32xf32>
    %134 = math.tanh %133 : vector<2x32xf32>
    %135 = arith.mulf %130, %134 : vector<2x32xf32>
    %136 = vector.extract_strided_slice %6 {offsets = [14, 0], sizes = [2, 128], strides = [1, 1]} : vector<16x128xf32> to vector<2x128xf32>
    %cst_25 = arith.constant dense<0.000000e+00> : vector<2x128xf32>
    %137 = tpu.matmul %135, %7, %cst_25 {dimension_numbers = #tpu.dot_dimension_numbers<[1], [0], [0], [1], [0, 0, 1, 1], [], []>} : vector<2x32xf32>, vector<32x128xf32>, vector<2x128xf32> -> vector<2x128xf32>
    %138 = arith.addf %136, %137 : vector<2x128xf32>
    %139 = arith.negf %138 : vector<2x128xf32>
    %140 = math.exp %139 : vector<2x128xf32>
    %cst_26 = arith.constant 1.000000e+00 : f32
    %141 = vector.broadcast %cst_26 : f32 to vector<2x128xf32>
    %142 = arith.addf %141, %140 : vector<2x128xf32>
    %143 = arith.divf %141, %142 : vector<2x128xf32>
    %144 = math.tanh %138 : vector<2x128xf32>
    %145 = vector.extract_strided_slice %143 {offsets = [0, 0], sizes = [2, 32], strides = [1, 1]} : vector<2x128xf32> to vector<2x32xf32>
    %146 = vector.extract_strided_slice %143 {offsets = [0, 32], sizes = [2, 32], strides = [1, 1]} : vector<2x128xf32> to vector<2x32xf32>
    %147 = vector.extract_strided_slice %144 {offsets = [0, 64], sizes = [2, 32], strides = [1, 1]} : vector<2x128xf32> to vector<2x32xf32>
    %148 = vector.extract_strided_slice %143 {offsets = [0, 96], sizes = [2, 32], strides = [1, 1]} : vector<2x128xf32> to vector<2x32xf32>
    %149 = arith.mulf %146, %133 : vector<2x32xf32>
    %150 = arith.mulf %145, %147 : vector<2x32xf32>
    %151 = arith.addf %149, %150 : vector<2x32xf32>
    %152 = math.tanh %151 : vector<2x32xf32>
    %153 = arith.mulf %148, %152 : vector<2x32xf32>
    %154 = tpu.concatenate %27, %45, %63, %81, %99, %117, %135, %153 in 0 : vector<2x32xf32>, vector<2x32xf32>, vector<2x32xf32>, vector<2x32xf32>, vector<2x32xf32>, vector<2x32xf32>, vector<2x32xf32>, vector<2x32xf32> -> vector<16x32xf32>
    %c0_27 = arith.constant 0 : index
    %c32 = arith.constant 32 : index
    %155 = vector.load %arg4[%c0_27, %c32] : memref<16x64xf32, #tpu.memory_space<vmem>>, vector<16x32xf32>
    tpu.vector_store %arg4[%c0_27, %c32], %154 {strides = array<i32>} : memref<16x64xf32, #tpu.memory_space<vmem>>, vector<16x32xf32>,
    return
  }
}

</mosaic_0001>

<llo_original>
// kernel: tpu_custom_call.1
$region0: #{tpu_custom_call.1}
  #allocation0 [shape = 'u32[]', space=smem, size = 0x4, offset = 0x4, fixed_abs, tag = 'smem constant byte address 0x4 - core index']
  #allocation1 [shape = 'u32[144,128]{1,0:T(1,128)}', space=vmem, size = 0x12000, scoped, tag = 'internal scratch']
  %s0 = inlined_call_operand.hbm [shape: f32[16,32], index: 0, kind: input, shape index: {}]
  %s1 = inlined_call_operand.hbm [shape: f32[32,128], index: 1, kind: input, shape index: {}]
  %s2 = inlined_call_operand.hbm [shape: f32[32,128], index: 2, kind: input, shape index: {}]
  %s3 = inlined_call_operand.vmem [shape: f32[1,128], index: 3, kind: input, shape index: {}]
  %s4 = inlined_call_operand.hbm [shape: f32[16,64], index: 4, kind: output, shape index: {}]
  %s5 = sld [smem:[#allocation0]]
  $region38: #{tpu_custom_call.1} parent=0
    _
  %s7 = ssub.s32 1, %s5
  %s8 = scalar_select 0, %s7, %s5
  $region1: #{tpu_custom_call.1} parent=0
    #allocation2 [shape = 'u8[8192]{0}', space=vmem, size = 0x2000, scoped, tag = 'input window, operand 0, single buffered']
    #allocation3 [shape = 's32[1]{0}', space=sflag, size = 0x4, scoped, tag = 'scoped memory for tpu_custom_call.1']
    #allocation4 [shape = 's32[1]{0}', space=sflag, size = 0x4, scoped, tag = 'scoped memory for tpu_custom_call.1']
    #allocation5 [shape = 'u8[16384]{0}', space=vmem, size = 0x4000, scoped, tag = 'input window, operand 1, single buffered']
    #allocation6 [shape = 's32[1]{0}', space=sflag, size = 0x4, scoped, tag = 'scoped memory for tpu_custom_call.1']
    #allocation7 [shape = 'u8[16384]{0}', space=vmem, size = 0x4000, scoped, tag = 'input window, operand 2, single buffered']
    #allocation8 [shape = 'u8[8192]{0}', space=vmem, size = 0x2000, scoped, tag = 'output window, operand 0, single buffered']
    %9 = vsyncpa [#allocation3], 0
    %10 = vsyncpa [#allocation6], 0
    %11 = vsyncpa [#allocation4], 0
    // Predicated region
    $region2: #{tpu_custom_call.1} parent=1 // pred_check
      _
    $region3: #{tpu_custom_call.1} parent=1 // pred_check_branch
      %13 = sbr.rel (0) target = $region5
    $region4: #{tpu_custom_call.1} parent=1 // pred_region
      %s15 = ssub.s32 256, 256
      %16 = vsyncadd [#allocation3], %s15
      %s17 = sshll.u32 [#allocation2], 4
      %s18 = int_to_ptr.vmem [resolvable:$true] %s17
      %23 = dma.hbm_to_vmem [thread:$0]  %s0, 256, %s18, [#allocation3], 128, 128, 8
    $region5: #{tpu_custom_call.1} parent=1 // pred_fallthru
      _
    // Predicated region
    $region6: #{tpu_custom_call.1} parent=1 // pred_check
      _
    $region7: #{tpu_custom_call.1} parent=1 // pred_check_branch
      %25 = sbr.rel (0) target = $region9
    $region8: #{tpu_custom_call.1} parent=1 // pred_region
      %s27 = ssub.s32 512, 512
      %28 = vsyncadd [#allocation6], %s27
      %s29 = sshll.u32 [#allocation5], 4
      %s30 = int_to_ptr.vmem [resolvable:$true] %s29
      %35 = dma.hbm_to_vmem [thread:$0]  %s1, 512, %s30, [#allocation6], 128, 128, 8
    $region9: #{tpu_custom_call.1} parent=1 // pred_fallthru
      _
    // Predicated region
    $region10: #{tpu_custom_call.1} parent=1 // pred_check
      _
    $region11: #{tpu_custom_call.1} parent=1 // pred_check_branch
      %37 = sbr.rel (0) target = $region13
    $region12: #{tpu_custom_call.1} parent=1 // pred_region
      %s39 = ssub.s32 512, 512
      %40 = vsyncadd [#allocation6], %s39
      %s41 = sshll.u32 [#allocation7], 4
      %s42 = int_to_ptr.vmem [resolvable:$true] %s41
      %47 = dma.hbm_to_vmem [thread:$0]  %s2, 512, %s42, [#allocation6], 128, 128, 8
    $region13: #{tpu_custom_call.1} parent=1 // pred_fallthru
      _
    // Predicated region
    $region14: #{tpu_custom_call.1} parent=1 // pred_check
      _
    $region15: #{tpu_custom_call.1} parent=1 // pred_check_branch
      %49 = sbr.rel (0) target = $region17
    $region16: #{tpu_custom_call.1} parent=1 // pred_region
      _
    $region17: #{tpu_custom_call.1} parent=1 // pred_fallthru
      _
    // Predicated region
    $region18: #{tpu_custom_call.1} parent=1 // pred_check
      _
    $region19: #{tpu_custom_call.1} parent=1 // pred_check_branch
      %51 = sbr.rel (0) target = $region21
    $region20: #{tpu_custom_call.1} parent=1 // pred_region
      %52 = dma.done [#allocation3], 256
    $region21: #{tpu_custom_call.1} parent=1 // pred_fallthru
      _
    // Predicated region
    $region22: #{tpu_custom_call.1} parent=1 // pred_check
      _
    $region23: #{tpu_custom_call.1} parent=1 // pred_check_branch
      %54 = sbr.rel (0) target = $region25
    $region24: #{tpu_custom_call.1} parent=1 // pred_region
      %55 = dma.done [#allocation6], 512
    $region25: #{tpu_custom_call.1} parent=1 // pred_fallthru
      _
    // Predicated region
    $region26: #{tpu_custom_call.1} parent=1 // pred_check
      _
    $region27: #{tpu_custom_call.1} parent=1 // pred_check_branch
      %57 = sbr.rel (0) target = $region29
    $region28: #{tpu_custom_call.1} parent=1 // pred_region
      %58 = dma.done [#allocation6], 512
    $region29: #{tpu_custom_call.1} parent=1 // pred_fallthru
      _
    %v59 = vld [vmem:[#allocation2] sm:$0xff]
    %v60 = vld [vmem:[#allocation2 + $0x8] sm:$0xff]
    %vm61 = vcmask 261120
    %62 = vst.msk [vmem:[#allocation8] sm:$0xff] %vm61, %v59
    %63 = vst.msk [vmem:[#allocation8 + $0x8] sm:$0xff] %vm61, %v60
    %v64 = vld [vmem:[#allocation5] sm:$0xff]
    %v65 = vld [vmem:[#allocation5 + $0x8] sm:$0xff]
    %v66 = vld [vmem:[#allocation5 + $0x10] sm:$0xff]
    %v67 = vld [vmem:[#allocation5 + $0x18] sm:$0xff]
    %v68 = vld [vmem:[%s3] sm:$0x1]
    %v70 = vlaneseq
    %v71 = vshrl.u32 %v70, 7
    %v72 = vsub.s32 0, %v71
    %v73 = vrot.slane %v68, %v72
    %v76 = vsel %vm61, %v59, 0
    %v79 = vsel %vm61, %v60, 0
    %81 = vmatprep.subr.mxu0 0.0
    %82 = vmatpush1.msra.mxu0 %v64
    %83 = vmatprep.subr.mxu0 0.0
    %84 = vmatpush1.msra.mxu0 %v65
    %85 = vmatprep.subr.mxu0 0.0
    %86 = vmatpush1.msra.mxu0 %v66
    %87 = vmatprep.subr.mxu0 0.0
    %88 = vmatpush1.msra.mxu0 %v67
    %89 = vmatprep.subr.mxu0 0.0
    %90 = vmatpush1.msra.mxu0 0.0
    %91 = vmatprep.subr.mxu0 0.0
    %92 = vmatpush1.msra.mxu0 0.0
    %93 = vmatprep.subr.mxu0 0.0
    %94 = vmatpush1.msra.mxu0 0.0
    %95 = vmatprep.subr.mxu0 0.0
    %96 = vmatpush1.msra.mxu0 0.0
    %97 = vmatprep.subr.mxu0 0.0
    %98 = vmatpush1.msra.mxu0 0.0
    %99 = vmatprep.subr.mxu0 0.0
    %100 = vmatpush1.msra.mxu0 0.0
    %101 = vmatprep.subr.mxu0 0.0
    %102 = vmatpush1.msra.mxu0 0.0
    %103 = vmatprep.subr.mxu0 0.0
    %104 = vmatpush1.msra.mxu0 0.0
    %105 = vmatprep.subr.mxu0 0.0
    %106 = vmatpush1.msra.mxu0 0.0
    %107 = vmatprep.subr.mxu0 0.0
    %108 = vmatpush1.msra.mxu0 0.0
    %109 = vmatprep.subr.mxu0 0.0
    %110 = vmatpush1.msra.mxu0 0.0
    %111 = vmatprep.subr.mxu0 0.0
    %112 = vmatpush1.msra.mxu0 0.0
    %113 = vmatprep.subr.mxu0 0.0
    %114 = vmatpush1.msra.mxu0 0.0
    %115 = vmatprep.subr.mxu0 0.0
    %116 = vmatpush1.msra.mxu0 0.0
    %117 = vmatprep.subr.mxu0 0.0
    %118 = vmatpush1.msra.mxu0 0.0
    %119 = vmatprep.subr.mxu0 0.0
    %120 = vmatpush1.msra.mxu0 0.0
    %121 = vmatprep.subr.mxu0 0.0
    %122 = vmatpush1.msra.mxu0 0.0
    %123 = vmatprep.subr.mxu0 0.0
    %124 = vmatpush1.msra.mxu0 0.0
    %125 = vmatprep.subr.mxu0 0.0
    %126 = vmatpush1.msra.mxu0 0.0
    %127 = vmatprep.subr.mxu0 0.0
    %128 = vmatpush1.msra.mxu0 0.0
    %129 = vmatprep.subr.mxu0 0.0
    %130 = vmatpush1.msra.mxu0 0.0
    %131 = vmatprep.subr.mxu0 0.0
    %132 = vmatpush1.msra.mxu0 0.0
    %133 = vmatprep.subr.mxu0 0.0
    %134 = vmatpush1.msra.mxu0 0.0
    %135 = vmatprep.subr.mxu0 0.0
    %136 = vmatpush1.msra.mxu0 0.0
    %137 = vmatprep.subr.mxu0 0.0
    %138 = vmatpush1.msra.mxu0 0.0
    %139 = vmatprep.subr.mxu0 0.0
    %140 = vmatpush1.msra.mxu0 0.0
    %141 = vmatprep.subr.mxu0 0.0
    %142 = vmatpush1.msra.mxu0 0.0
    %143 = vmatprep.subr.mxu0 0.0
    %144 = vmatpush1.msra.mxu0 0.0
    %145 = vmatprep.mubr.f32.mxu0 0.0
    %146 = vmatmul.mubr.f32.gmra.mrb[0].mxu0 %v76
    %v147 = vpop.f32.mrb[0].mxu0
    %v148 = vadd.f32 %v73, %v147
    %v149 = vpop.f32.mrb[0].mxu0
    %150 = vmatprep.mubr.f32.mxu0 0.0
    %151 = vmatmul.mubr.f32.gmra.mrb[0].mxu0 %v79
    %v152 = vpop.f32.mrb[0].mxu0
    %v153 = vadd.f32 %v73, %v152
    %v154 = vpop.f32.mrb[0].mxu0
    %155 = vdwg.mxu0
    %v156 = vld [vmem:[#allocation7] sm:$0xff]
    %v157 = vld [vmem:[#allocation7 + $0x8] sm:$0xff]
    %v158 = vld [vmem:[#allocation7 + $0x10] sm:$0xff]
    %v159 = vld [vmem:[#allocation7 + $0x18] sm:$0xff]
    %v161 = vsel %vm61, 0.0, 0
    %163 = vmatprep.subr.mxu0 0.0
    %164 = vmatpush1.msra.mxu0 %v156
    %165 = vmatprep.subr.mxu0 0.0
    %166 = vmatpush1.msra.mxu0 %v157
    %167 = vmatprep.subr.mxu0 0.0
    %168 = vmatpush1.msra.mxu0 %v158
    %169 = vmatprep.subr.mxu0 0.0
    %170 = vmatpush1.msra.mxu0 %v159
    %171 = vmatprep.subr.mxu0 0.0
    %172 = vmatpush1.msra.mxu0 0.0
    %173 = vmatprep.subr.mxu0 0.0
    %174 = vmatpush1.msra.mxu0 0.0
    %175 = vmatprep.subr.mxu0 0.0
    %176 = vmatpush1.msra.mxu0 0.0
    %177 = vmatprep.subr.mxu0 0.0
    %178 = vmatpush1.msra.mxu0 0.0
    %179 = vmatprep.subr.mxu0 0.0
    %180 = vmatpush1.msra.mxu0 0.0
    %181 = vmatprep.subr.mxu0 0.0
    %182 = vmatpush1.msra.mxu0 0.0
    %183 = vmatprep.subr.mxu0 0.0
    %184 = vmatpush1.msra.mxu0 0.0
    %185 = vmatprep.subr.mxu0 0.0
    %186 = vmatpush1.msra.mxu0 0.0
    %187 = vmatprep.subr.mxu0 0.0
    %188 = vmatpush1.msra.mxu0 0.0
    %189 = vmatprep.subr.mxu0 0.0
    %190 = vmatpush1.msra.mxu0 0.0
    %191 = vmatprep.subr.mxu0 0.0
    %192 = vmatpush1.msra.mxu0 0.0
    %193 = vmatprep.subr.mxu0 0.0
    %194 = vmatpush1.msra.mxu0 0.0
    %195 = vmatprep.subr.mxu0 0.0
    %196 = vmatpush1.msra.mxu0 0.0
    %197 = vmatprep.subr.mxu0 0.0
    %198 = vmatpush1.msra.mxu0 0.0
    %199 = vmatprep.subr.mxu0 0.0
    %200 = vmatpush1.msra.mxu0 0.0
    %201 = vmatprep.subr.mxu0 0.0
    %202 = vmatpush1.msra.mxu0 0.0
    %203 = vmatprep.subr.mxu0 0.0
    %204 = vmatpush1.msra.mxu0 0.0
    %205 = vmatprep.subr.mxu0 0.0
    %206 = vmatpush1.msra.mxu0 0.0
    %207 = vmatprep.subr.mxu0 0.0
    %208 = vmatpush1.msra.mxu0 0.0
    %209 = vmatprep.subr.mxu0 0.0
    %210 = vmatpush1.msra.mxu0 0.0
    %211 = vmatprep.subr.mxu0 0.0
    %212 = vmatpush1.msra.mxu0 0.0
    %213 = vmatprep.subr.mxu0 0.0
    %214 = vmatpush1.msra.mxu0 0.0
    %215 = vmatprep.subr.mxu0 0.0
    %216 = vmatpush1.msra.mxu0 0.0
    %217 = vmatprep.subr.mxu0 0.0
    %218 = vmatpush1.msra.mxu0 0.0
    %219 = vmatprep.subr.mxu0 0.0
    %220 = vmatpush1.msra.mxu0 0.0
    %221 = vmatprep.subr.mxu0 0.0
    %222 = vmatpush1.msra.mxu0 0.0
    %223 = vmatprep.subr.mxu0 0.0
    %224 = vmatpush1.msra.mxu0 0.0
    %225 = vmatprep.subr.mxu0 0.0
    %226 = vmatpush1.msra.mxu0 0.0
    %227 = vmatprep.mubr.f32.mxu0 0.0
    %228 = vmatmul.mubr.f32.gmra.mrb[0].mxu0 %v161
    %v229 = vpop.f32.mrb[0].mxu0
    %v230 = vadd.f32 0.0, %v229
    %v231 = vpop.f32.mrb[0].mxu0
    %232 = vdwg.mxu0
    %v233 = vadd.f32 %v148, %v230
    %v234 = vxor.u32 %v233, 2147483648
    %v235 = vmul.f32 %v234, 1.442695
    %v236 = vpow.pop %v235
    %v237 = vadd.f32 %v236, 1.0
    %v238 = vrcp.pop %v237
    %v239 = vmul.f32 1.0, %v238
    %v240 = vtanh.pop %v233
    %v241 = vmul.f32 %v239, 0.0
    %243 = vrot.lane.b32.xlu0 %v240, 64
    %v244 = vpop.permute.xlu0 %243
    %v246 = vmul.f32 %v239, %v244
    %248 = vrot.lane.b32.xlu0 %v246, 32
    %v249 = vpop.permute.xlu0 %248
    %v251 = vadd.f32 %v241, %v249
    %v252 = vtanh.pop %v251
    %254 = vrot.lane.b32.xlu0 %v252, 64
    %v255 = vpop.permute.xlu0 %254
    %v257 = vmul.f32 %v239, %v255
    %259 = vrot.lane.b32.xlu0 %v257, 32
    %v260 = vpop.permute.xlu0 %259
    %v261 = vsel %vm61, %v260, 0
    %263 = vmatprep.subr.mxu0 0.0
    %264 = vmatpush1.msra.mxu0 %v156
    %265 = vmatprep.subr.mxu0 0.0
    %266 = vmatpush1.msra.mxu0 %v157
    %267 = vmatprep.subr.mxu0 0.0
    %268 = vmatpush1.msra.mxu0 %v158
    %269 = vmatprep.subr.mxu0 0.0
    %270 = vmatpush1.msra.mxu0 %v159
    %271 = vmatprep.subr.mxu0 0.0
    %272 = vmatpush1.msra.mxu0 0.0
    %273 = vmatprep.subr.mxu0 0.0
    %274 = vmatpush1.msra.mxu0 0.0
    %275 = vmatprep.subr.mxu0 0.0
    %276 = vmatpush1.msra.mxu0 0.0
    %277 = vmatprep.subr.mxu0 0.0
    %278 = vmatpush1.msra.mxu0 0.0
    %279 = vmatprep.subr.mxu0 0.0
    %280 = vmatpush1.msra.mxu0 0.0
    %281 = vmatprep.subr.mxu0 0.0
    %282 = vmatpush1.msra.mxu0 0.0
    %283 = vmatprep.subr.mxu0 0.0
    %284 = vmatpush1.msra.mxu0 0.0
    %285 = vmatprep.subr.mxu0 0.0
    %286 = vmatpush1.msra.mxu0 0.0
    %287 = vmatprep.subr.mxu0 0.0
    %288 = vmatpush1.msra.mxu0 0.0
    %289 = vmatprep.subr.mxu0 0.0
    %290 = vmatpush1.msra.mxu0 0.0
    %291 = vmatprep.subr.mxu0 0.0
    %292 = vmatpush1.msra.mxu0 0.0
    %293 = vmatprep.subr.mxu0 0.0
    %294 = vmatpush1.msra.mxu0 0.0
    %295 = vmatprep.subr.mxu0 0.0
    %296 = vmatpush1.msra.mxu0 0.0
    %297 = vmatprep.subr.mxu0 0.0
    %298 = vmatpush1.msra.mxu0 0.0
    %299 = vmatprep.subr.mxu0 0.0
    %300 = vmatpush1.msra.mxu0 0.0
    %301 = vmatprep.subr.mxu0 0.0
    %302 = vmatpush1.msra.mxu0 0.0
    %303 = vmatprep.subr.mxu0 0.0
    %304 = vmatpush1.msra.mxu0 0.0
    %305 = vmatprep.subr.mxu0 0.0
    %306 = vmatpush1.msra.mxu0 0.0
    %307 = vmatprep.subr.mxu0 0.0
    %308 = vmatpush1.msra.mxu0 0.0
    %309 = vmatprep.subr.mxu0 0.0
    %310 = vmatpush1.msra.mxu0 0.0
    %311 = vmatprep.subr.mxu0 0.0
    %312 = vmatpush1.msra.mxu0 0.0
    %313 = vmatprep.subr.mxu0 0.0
    %314 = vmatpush1.msra.mxu0 0.0
    %315 = vmatprep.subr.mxu0 0.0
    %316 = vmatpush1.msra.mxu0 0.0
    %317 = vmatprep.subr.mxu0 0.0
    %318 = vmatpush1.msra.mxu0 0.0
    %319 = vmatprep.subr.mxu0 0.0
    %320 = vmatpush1.msra.mxu0 0.0
    %321 = vmatprep.subr.mxu0 0.0
    %322 = vmatpush1.msra.mxu0 0.0
    %323 = vmatprep.subr.mxu0 0.0
    %324 = vmatpush1.msra.mxu0 0.0
    %325 = vmatprep.subr.mxu0 0.0
    %326 = vmatpush1.msra.mxu0 0.0
    %327 = vmatprep.mubr.f32.mxu0 0.0
    %328 = vmatmul.mubr.f32.gmra.mrb[0].mxu0 %v261
    %v329 = vpop.f32.mrb[0].mxu0
    %v330 = vadd.f32 0.0, %v329
    %v331 = vpop.f32.mrb[0].mxu0
    %332 = vdwg.mxu0
    %v334 = vrot.slane %v330, 6
    %v336 = vadd.f32 %v148, %v334
    %v337 = vxor.u32 %v336, 2147483648
    %v338 = vmul.f32 %v337, 1.442695
    %v339 = vpow.pop %v338
    %v340 = vadd.f32 %v339, 1.0
    %v341 = vrcp.pop %v340
    %v342 = vmul.f32 1.0, %v341
    %v343 = vtanh.pop %v336
    %v345 = vrot.slane %v251, 6
    %v347 = vmul.f32 %v342, %v345
    %349 = vrot.lane.b32.xlu0 %v343, 64
    %v350 = vpop.permute.xlu0 %349
    %v352 = vmul.f32 %v342, %v350
    %354 = vrot.lane.b32.xlu0 %v352, 32
    %v355 = vpop.permute.xlu0 %354
    %v357 = vadd.f32 %v347, %v355
    %v358 = vtanh.pop %v357
    %360 = vrot.lane.b32.xlu0 %v358, 64
    %v361 = vpop.permute.xlu0 %360
    %v363 = vmul.f32 %v342, %v361
    %v365 = vrot.slane %v363, 2
    %366 = vrot.lane.b32.xlu0 %v365, 32
    %v367 = vpop.permute.xlu0 %366
    %v368 = vsel %vm61, %v367, 0
    %370 = vmatprep.subr.mxu0 0.0
    %371 = vmatpush1.msra.mxu0 %v156
    %372 = vmatprep.subr.mxu0 0.0
    %373 = vmatpush1.msra.mxu0 %v157
    %374 = vmatprep.subr.mxu0 0.0
    %375 = vmatpush1.msra.mxu0 %v158
    %376 = vmatprep.subr.mxu0 0.0
    %377 = vmatpush1.msra.mxu0 %v159
    %378 = vmatprep.subr.mxu0 0.0
    %379 = vmatpush1.msra.mxu0 0.0
    %380 = vmatprep.subr.mxu0 0.0
    %381 = vmatpush1.msra.mxu0 0.0
    %382 = vmatprep.subr.mxu0 0.0
    %383 = vmatpush1.msra.mxu0 0.0
    %384 = vmatprep.subr.mxu0 0.0
    %385 = vmatpush1.msra.mxu0 0.0
    %386 = vmatprep.subr.mxu0 0.0
    %387 = vmatpush1.msra.mxu0 0.0
    %388 = vmatprep.subr.mxu0 0.0
    %389 = vmatpush1.msra.mxu0 0.0
    %390 = vmatprep.subr.mxu0 0.0
    %391 = vmatpush1.msra.mxu0 0.0
    %392 = vmatprep.subr.mxu0 0.0
    %393 = vmatpush1.msra.mxu0 0.0
    %394 = vmatprep.subr.mxu0 0.0
    %395 = vmatpush1.msra.mxu0 0.0
    %396 = vmatprep.subr.mxu0 0.0
    %397 = vmatpush1.msra.mxu0 0.0
    %398 = vmatprep.subr.mxu0 0.0
    %399 = vmatpush1.msra.mxu0 0.0
    %400 = vmatprep.subr.mxu0 0.0
    %401 = vmatpush1.msra.mxu0 0.0
    %402 = vmatprep.subr.mxu0 0.0
    %403 = vmatpush1.msra.mxu0 0.0
    %404 = vmatprep.subr.mxu0 0.0
    %405 = vmatpush1.msra.mxu0 0.0
    %406 = vmatprep.subr.mxu0 0.0
    %407 = vmatpush1.msra.mxu0 0.0
    %408 = vmatprep.subr.mxu0 0.0
    %409 = vmatpush1.msra.mxu0 0.0
    %410 = vmatprep.subr.mxu0 0.0
    %411 = vmatpush1.msra.mxu0 0.0
    %412 = vmatprep.subr.mxu0 0.0
    %413 = vmatpush1.msra.mxu0 0.0
    %414 = vmatprep.subr.mxu0 0.0
    %415 = vmatpush1.msra.mxu0 0.0
    %416 = vmatprep.subr.mxu0 0.0
    %417 = vmatpush1.msra.mxu0 0.0
    %418 = vmatprep.subr.mxu0 0.0
    %419 = vmatpush1.msra.mxu0 0.0
    %420 = vmatprep.subr.mxu0 0.0
    %421 = vmatpush1.msra.mxu0 0.0
    %422 = vmatprep.subr.mxu0 0.0
    %423 = vmatpush1.msra.mxu0 0.0
    %424 = vmatprep.subr.mxu0 0.0
    %425 = vmatpush1.msra.mxu0 0.0
    %426 = vmatprep.subr.mxu0 0.0
    %427 = vmatpush1.msra.mxu0 0.0
    %428 = vmatprep.subr.mxu0 0.0
    %429 = vmatpush1.msra.mxu0 0.0
    %430 = vmatprep.subr.mxu0 0.0
    %431 = vmatpush1.msra.mxu0 0.0
    %432 = vmatprep.subr.mxu0 0.0
    %433 = vmatpush1.msra.mxu0 0.0
    %434 = vmatprep.mubr.f32.mxu0 0.0
    %435 = vmatmul.mubr.f32.gmra.mrb[0].mxu0 %v368
    %v436 = vpop.f32.mrb[0].mxu0
    %v437 = vadd.f32 0.0, %v436
    %v438 = vpop.f32.mrb[0].mxu0
    %439 = vdwg.mxu0
    %v441 = vrot.slane %v437, 4
    %v443 = vadd.f32 %v148, %v441
    %v444 = vxor.u32 %v443, 2147483648
    %v445 = vmul.f32 %v444, 1.442695
    %v446 = vpow.pop %v445
    %v447 = vadd.f32 %v446, 1.0
    %v448 = vrcp.pop %v447
    %v449 = vmul.f32 1.0, %v448
    %v450 = vtanh.pop %v443
    %v452 = vrot.slane %v357, 6
    %v454 = vmul.f32 %v449, %v452
    %456 = vrot.lane.b32.xlu0 %v450, 64
    %v457 = vpop.permute.xlu0 %456
    %v459 = vmul.f32 %v449, %v457
    %461 = vrot.lane.b32.xlu0 %v459, 32
    %v462 = vpop.permute.xlu0 %461
    %v464 = vadd.f32 %v454, %v462
    %v465 = vtanh.pop %v464
    %467 = vrot.lane.b32.xlu0 %v465, 64
    %v468 = vpop.permute.xlu0 %467
    %v470 = vmul.f32 %v449, %v468
    %v472 = vrot.slane %v470, 4
    %473 = vrot.lane.b32.xlu0 %v472, 32
    %v474 = vpop.permute.xlu0 %473
    %v475 = vsel %vm61, %v474, 0
    %477 = vmatprep.subr.mxu0 0.0
    %478 = vmatpush1.msra.mxu0 %v156
    %479 = vmatprep.subr.mxu0 0.0
    %480 = vmatpush1.msra.mxu0 %v157
    %481 = vmatprep.subr.mxu0 0.0
    %482 = vmatpush1.msra.mxu0 %v158
    %483 = vmatprep.subr.mxu0 0.0
    %484 = vmatpush1.msra.mxu0 %v159
    %485 = vmatprep.subr.mxu0 0.0
    %486 = vmatpush1.msra.mxu0 0.0
    %487 = vmatprep.subr.mxu0 0.0
    %488 = vmatpush1.msra.mxu0 0.0
    %489 = vmatprep.subr.mxu0 0.0
    %490 = vmatpush1.msra.mxu0 0.0
    %491 = vmatprep.subr.mxu0 0.0
    %492 = vmatpush1.msra.mxu0 0.0
    %493 = vmatprep.subr.mxu0 0.0
    %494 = vmatpush1.msra.mxu0 0.0
    %495 = vmatprep.subr.mxu0 0.0
    %496 = vmatpush1.msra.mxu0 0.0
    %497 = vmatprep.subr.mxu0 0.0
    %498 = vmatpush1.msra.mxu0 0.0
    %499 = vmatprep.subr.mxu0 0.0
    %500 = vmatpush1.msra.mxu0 0.0
    %501 = vmatprep.subr.mxu0 0.0
    %502 = vmatpush1.msra.mxu0 0.0
    %503 = vmatprep.subr.mxu0 0.0
    %504 = vmatpush1.msra.mxu0 0.0
    %505 = vmatprep.subr.mxu0 0.0
    %506 = vmatpush1.msra.mxu0 0.0
    %507 = vmatprep.subr.mxu0 0.0
    %508 = vmatpush1.msra.mxu0 0.0
    %509 = vmatprep.subr.mxu0 0.0
    %510 = vmatpush1.msra.mxu0 0.0
    %511 = vmatprep.subr.mxu0 0.0
    %512 = vmatpush1.msra.mxu0 0.0
    %513 = vmatprep.subr.mxu0 0.0
    %514 = vmatpush1.msra.mxu0 0.0
    %515 = vmatprep.subr.mxu0 0.0
    %516 = vmatpush1.msra.mxu0 0.0
    %517 = vmatprep.subr.mxu0 0.0
    %518 = vmatpush1.msra.mxu0 0.0
    %519 = vmatprep.subr.mxu0 0.0
    %520 = vmatpush1.msra.mxu0 0.0
    %521 = vmatprep.subr.mxu0 0.0
    %522 = vmatpush1.msra.mxu0 0.0
    %523 = vmatprep.subr.mxu0 0.0
    %524 = vmatpush1.msra.mxu0 0.0
    %525 = vmatprep.subr.mxu0 0.0
    %526 = vmatpush1.msra.mxu0 0.0
    %527 = vmatprep.subr.mxu0 0.0
    %528 = vmatpush1.msra.mxu0 0.0
    %529 = vmatprep.subr.mxu0 0.0
    %530 = vmatpush1.msra.mxu0 0.0
    %531 = vmatprep.subr.mxu0 0.0
    %532 = vmatpush1.msra.mxu0 0.0
    %533 = vmatprep.subr.mxu0 0.0
    %534 = vmatpush1.msra.mxu0 0.0
    %535 = vmatprep.subr.mxu0 0.0
    %536 = vmatpush1.msra.mxu0 0.0
    %537 = vmatprep.subr.mxu0 0.0
    %538 = vmatpush1.msra.mxu0 0.0
    %539 = vmatprep.subr.mxu0 0.0
    %540 = vmatpush1.msra.mxu0 0.0
    %541 = vmatprep.mubr.f32.mxu0 0.0
    %542 = vmatmul.mubr.f32.gmra.mrb[0].mxu0 %v475
    %v543 = vpop.f32.mrb[0].mxu0
    %v544 = vadd.f32 0.0, %v543
    %v545 = vpop.f32.mrb[0].mxu0
    %546 = vdwg.mxu0
    %v548 = vrot.slane %v544, 2
    %v550 = vadd.f32 %v148, %v548
    %v551 = vxor.u32 %v550, 2147483648
    %v552 = vmul.f32 %v551, 1.442695
    %v553 = vpow.pop %v552
    %v554 = vadd.f32 %v553, 1.0
    %v555 = vrcp.pop %v554
    %v556 = vmul.f32 1.0, %v555
    %v557 = vtanh.pop %v550
    %v559 = vrot.slane %v464, 6
    %v561 = vmul.f32 %v556, %v559
    %563 = vrot.lane.b32.xlu0 %v557, 64
    %v564 = vpop.permute.xlu0 %563
    %v566 = vmul.f32 %v556, %v564
    %568 = vrot.lane.b32.xlu0 %v566, 32
    %v569 = vpop.permute.xlu0 %568
    %v571 = vadd.f32 %v561, %v569
    %v572 = vtanh.pop %v571
    %574 = vrot.lane.b32.xlu0 %v572, 64
    %v575 = vpop.permute.xlu0 %574
    %v577 = vmul.f32 %v556, %v575
    %v579 = vrot.slane %v577, 6
    %580 = vrot.lane.b32.xlu0 %v579, 32
    %v581 = vpop.permute.xlu0 %580
    %v582 = vsel %vm61, %v581, 0
    %584 = vmatprep.subr.mxu0 0.0
    %585 = vmatpush1.msra.mxu0 %v156
    %586 = vmatprep.subr.mxu0 0.0
    %587 = vmatpush1.msra.mxu0 %v157
    %588 = vmatprep.subr.mxu0 0.0
    %589 = vmatpush1.msra.mxu0 %v158
    %590 = vmatprep.subr.mxu0 0.0
    %591 = vmatpush1.msra.mxu0 %v159
    %592 = vmatprep.subr.mxu0 0.0
    %593 = vmatpush1.msra.mxu0 0.0
    %594 = vmatprep.subr.mxu0 0.0
    %595 = vmatpush1.msra.mxu0 0.0
    %596 = vmatprep.subr.mxu0 0.0
    %597 = vmatpush1.msra.mxu0 0.0
    %598 = vmatprep.subr.mxu0 0.0
    %599 = vmatpush1.msra.mxu0 0.0
    %600 = vmatprep.subr.mxu0 0.0
    %601 = vmatpush1.msra.mxu0 0.0
    %602 = vmatprep.subr.mxu0 0.0
    %603 = vmatpush1.msra.mxu0 0.0
    %604 = vmatprep.subr.mxu0 0.0
    %605 = vmatpush1.msra.mxu0 0.0
    %606 = vmatprep.subr.mxu0 0.0
    %607 = vmatpush1.msra.mxu0 0.0
    %608 = vmatprep.subr.mxu0 0.0
    %609 = vmatpush1.msra.mxu0 0.0
    %610 = vmatprep.subr.mxu0 0.0
    %611 = vmatpush1.msra.mxu0 0.0
    %612 = vmatprep.subr.mxu0 0.0
    %613 = vmatpush1.msra.mxu0 0.0
    %614 = vmatprep.subr.mxu0 0.0
    %615 = vmatpush1.msra.mxu0 0.0
    %616 = vmatprep.subr.mxu0 0.0
    %617 = vmatpush1.msra.mxu0 0.0
    %618 = vmatprep.subr.mxu0 0.0
    %619 = vmatpush1.msra.mxu0 0.0
    %620 = vmatprep.subr.mxu0 0.0
    %621 = vmatpush1.msra.mxu0 0.0
    %622 = vmatprep.subr.mxu0 0.0
    %623 = vmatpush1.msra.mxu0 0.0
    %624 = vmatprep.subr.mxu0 0.0
    %625 = vmatpush1.msra.mxu0 0.0
    %626 = vmatprep.subr.mxu0 0.0
    %627 = vmatpush1.msra.mxu0 0.0
    %628 = vmatprep.subr.mxu0 0.0
    %629 = vmatpush1.msra.mxu0 0.0
    %630 = vmatprep.subr.mxu0 0.0
    %631 = vmatpush1.msra.mxu0 0.0
    %632 = vmatprep.subr.mxu0 0.0
    %633 = vmatpush1.msra.mxu0 0.0
    %634 = vmatprep.subr.mxu0 0.0
    %635 = vmatpush1.msra.mxu0 0.0
    %636 = vmatprep.subr.mxu0 0.0
    %637 = vmatpush1.msra.mxu0 0.0
    %638 = vmatprep.subr.mxu0 0.0
    %639 = vmatpush1.msra.mxu0 0.0
    %640 = vmatprep.subr.mxu0 0.0
    %641 = vmatpush1.msra.mxu0 0.0
    %642 = vmatprep.subr.mxu0 0.0
    %643 = vmatpush1.msra.mxu0 0.0
    %644 = vmatprep.subr.mxu0 0.0
    %645 = vmatpush1.msra.mxu0 0.0
    %646 = vmatprep.subr.mxu0 0.0
    %647 = vmatpush1.msra.mxu0 0.0
    %648 = vmatprep.mubr.f32.mxu0 0.0
    %649 = vmatmul.mubr.f32.gmra.mrb[0].mxu0 %v582
    %v650 = vpop.f32.mrb[0].mxu0
    %v651 = vadd.f32 0.0, %v650
    %v652 = vpop.f32.mrb[0].mxu0
    %653 = vdwg.mxu0
    %v654 = vadd.f32 %v153, %v651
    %v655 = vxor.u32 %v654, 2147483648
    %v656 = vmul.f32 %v655, 1.442695
    %v657 = vpow.pop %v656
    %v658 = vadd.f32 %v657, 1.0
    %v659 = vrcp.pop %v658
    %v660 = vmul.f32 1.0, %v659
    %v661 = vtanh.pop %v654
    %v663 = vrot.slane %v571, 6
    %v665 = vmul.f32 %v660, %v663
    %667 = vrot.lane.b32.xlu0 %v661, 64
    %v668 = vpop.permute.xlu0 %667
    %v670 = vmul.f32 %v660, %v668
    %672 = vrot.lane.b32.xlu0 %v670, 32
    %v673 = vpop.permute.xlu0 %672
    %v675 = vadd.f32 %v665, %v673
    %v676 = vtanh.pop %v675
    %678 = vrot.lane.b32.xlu0 %v676, 64
    %v679 = vpop.permute.xlu0 %678
    %v681 = vmul.f32 %v660, %v679
    %683 = vrot.lane.b32.xlu0 %v681, 32
    %v684 = vpop.permute.xlu0 %683
    %v685 = vsel %vm61, %v684, 0
    %687 = vmatprep.subr.mxu0 0.0
    %688 = vmatpush1.msra.mxu0 %v156
    %689 = vmatprep.subr.mxu0 0.0
    %690 = vmatpush1.msra.mxu0 %v157
    %691 = vmatprep.subr.mxu0 0.0
    %692 = vmatpush1.msra.mxu0 %v158
    %693 = vmatprep.subr.mxu0 0.0
    %694 = vmatpush1.msra.mxu0 %v159
    %695 = vmatprep.subr.mxu0 0.0
    %696 = vmatpush1.msra.mxu0 0.0
    %697 = vmatprep.subr.mxu0 0.0
    %698 = vmatpush1.msra.mxu0 0.0
    %699 = vmatprep.subr.mxu0 0.0
    %700 = vmatpush1.msra.mxu0 0.0
    %701 = vmatprep.subr.mxu0 0.0
    %702 = vmatpush1.msra.mxu0 0.0
    %703 = vmatprep.subr.mxu0 0.0
    %704 = vmatpush1.msra.mxu0 0.0
    %705 = vmatprep.subr.mxu0 0.0
    %706 = vmatpush1.msra.mxu0 0.0
    %707 = vmatprep.subr.mxu0 0.0
    %708 = vmatpush1.msra.mxu0 0.0
    %709 = vmatprep.subr.mxu0 0.0
    %710 = vmatpush1.msra.mxu0 0.0
    %711 = vmatprep.subr.mxu0 0.0
    %712 = vmatpush1.msra.mxu0 0.0
    %713 = vmatprep.subr.mxu0 0.0
    %714 = vmatpush1.msra.mxu0 0.0
    %715 = vmatprep.subr.mxu0 0.0
    %716 = vmatpush1.msra.mxu0 0.0
    %717 = vmatprep.subr.mxu0 0.0
    %718 = vmatpush1.msra.mxu0 0.0
    %719 = vmatprep.subr.mxu0 0.0
    %720 = vmatpush1.msra.mxu0 0.0
    %721 = vmatprep.subr.mxu0 0.0
    %722 = vmatpush1.msra.mxu0 0.0
    %723 = vmatprep.subr.mxu0 0.0
    %724 = vmatpush1.msra.mxu0 0.0
    %725 = vmatprep.subr.mxu0 0.0
    %726 = vmatpush1.msra.mxu0 0.0
    %727 = vmatprep.subr.mxu0 0.0
    %728 = vmatpush1.msra.mxu0 0.0
    %729 = vmatprep.subr.mxu0 0.0
    %730 = vmatpush1.msra.mxu0 0.0
    %731 = vmatprep.subr.mxu0 0.0
    %732 = vmatpush1.msra.mxu0 0.0
    %733 = vmatprep.subr.mxu0 0.0
    %734 = vmatpush1.msra.mxu0 0.0
    %735 = vmatprep.subr.mxu0 0.0
    %736 = vmatpush1.msra.mxu0 0.0
    %737 = vmatprep.subr.mxu0 0.0
    %738 = vmatpush1.msra.mxu0 0.0
    %739 = vmatprep.subr.mxu0 0.0
    %740 = vmatpush1.msra.mxu0 0.0
    %741 = vmatprep.subr.mxu0 0.0
    %742 = vmatpush1.msra.mxu0 0.0
    %743 = vmatprep.subr.mxu0 0.0
    %744 = vmatpush1.msra.mxu0 0.0
    %745 = vmatprep.subr.mxu0 0.0
    %746 = vmatpush1.msra.mxu0 0.0
    %747 = vmatprep.subr.mxu0 0.0
    %748 = vmatpush1.msra.mxu0 0.0
    %749 = vmatprep.subr.mxu0 0.0
    %750 = vmatpush1.msra.mxu0 0.0
    %751 = vmatprep.mubr.f32.mxu0 0.0
    %752 = vmatmul.mubr.f32.gmra.mrb[0].mxu0 %v685
    %v753 = vpop.f32.mrb[0].mxu0
    %v754 = vadd.f32 0.0, %v753
    %v755 = vpop.f32.mrb[0].mxu0
    %756 = vdwg.mxu0
    %v758 = vrot.slane %v754, 6
    %v760 = vadd.f32 %v153, %v758
    %v761 = vxor.u32 %v760, 2147483648
    %v762 = vmul.f32 %v761, 1.442695
    %v763 = vpow.pop %v762
    %v764 = vadd.f32 %v763, 1.0
    %v765 = vrcp.pop %v764
    %v766 = vmul.f32 1.0, %v765
    %v767 = vtanh.pop %v760
    %v769 = vrot.slane %v675, 6
    %v771 = vmul.f32 %v766, %v769
    %773 = vrot.lane.b32.xlu0 %v767, 64
    %v774 = vpop.permute.xlu0 %773
    %v776 = vmul.f32 %v766, %v774
    %778 = vrot.lane.b32.xlu0 %v776, 32
    %v779 = vpop.permute.xlu0 %778
    %v781 = vadd.f32 %v771, %v779
    %v782 = vtanh.pop %v781
    %784 = vrot.lane.b32.xlu0 %v782, 64
    %v785 = vpop.permute.xlu0 %784
    %v787 = vmul.f32 %v766, %v785
    %v789 = vrot.slane %v787, 2
    %790 = vrot.lane.b32.xlu0 %v789, 32
    %v791 = vpop.permute.xlu0 %790
    %v792 = vsel %vm61, %v791, 0
    %794 = vmatprep.subr.mxu0 0.0
    %795 = vmatpush1.msra.mxu0 %v156
    %796 = vmatprep.subr.mxu0 0.0
    %797 = vmatpush1.msra.mxu0 %v157
    %798 = vmatprep.subr.mxu0 0.0
    %799 = vmatpush1.msra.mxu0 %v158
    %800 = vmatprep.subr.mxu0 0.0
    %801 = vmatpush1.msra.mxu0 %v159
    %802 = vmatprep.subr.mxu0 0.0
    %803 = vmatpush1.msra.mxu0 0.0
    %804 = vmatprep.subr.mxu0 0.0
    %805 = vmatpush1.msra.mxu0 0.0
    %806 = vmatprep.subr.mxu0 0.0
    %807 = vmatpush1.msra.mxu0 0.0
    %808 = vmatprep.subr.mxu0 0.0
    %809 = vmatpush1.msra.mxu0 0.0
    %810 = vmatprep.subr.mxu0 0.0
    %811 = vmatpush1.msra.mxu0 0.0
    %812 = vmatprep.subr.mxu0 0.0
    %813 = vmatpush1.msra.mxu0 0.0
    %814 = vmatprep.subr.mxu0 0.0
    %815 = vmatpush1.msra.mxu0 0.0
    %816 = vmatprep.subr.mxu0 0.0
    %817 = vmatpush1.msra.mxu0 0.0
    %818 = vmatprep.subr.mxu0 0.0
    %819 = vmatpush1.msra.mxu0 0.0
    %820 = vmatprep.subr.mxu0 0.0
    %821 = vmatpush1.msra.mxu0 0.0
    %822 = vmatprep.subr.mxu0 0.0
    %823 = vmatpush1.msra.mxu0 0.0
    %824 = vmatprep.subr.mxu0 0.0
    %825 = vmatpush1.msra.mxu0 0.0
    %826 = vmatprep.subr.mxu0 0.0
    %827 = vmatpush1.msra.mxu0 0.0
    %828 = vmatprep.subr.mxu0 0.0
    %829 = vmatpush1.msra.mxu0 0.0
    %830 = vmatprep.subr.mxu0 0.0
    %831 = vmatpush1.msra.mxu0 0.0
    %832 = vmatprep.subr.mxu0 0.0
    %833 = vmatpush1.msra.mxu0 0.0
    %834 = vmatprep.subr.mxu0 0.0
    %835 = vmatpush1.msra.mxu0 0.0
    %836 = vmatprep.subr.mxu0 0.0
    %837 = vmatpush1.msra.mxu0 0.0
    %838 = vmatprep.subr.mxu0 0.0
    %839 = vmatpush1.msra.mxu0 0.0
    %840 = vmatprep.subr.mxu0 0.0
    %841 = vmatpush1.msra.mxu0 0.0
    %842 = vmatprep.subr.mxu0 0.0
    %843 = vmatpush1.msra.mxu0 0.0
    %844 = vmatprep.subr.mxu0 0.0
    %845 = vmatpush1.msra.mxu0 0.0
    %846 = vmatprep.subr.mxu0 0.0
    %847 = vmatpush1.msra.mxu0 0.0
    %848 = vmatprep.subr.mxu0 0.0
    %849 = vmatpush1.msra.mxu0 0.0
    %850 = vmatprep.subr.mxu0 0.0
    %851 = vmatpush1.msra.mxu0 0.0
    %852 = vmatprep.subr.mxu0 0.0
    %853 = vmatpush1.msra.mxu0 0.0
    %854 = vmatprep.subr.mxu0 0.0
    %855 = vmatpush1.msra.mxu0 0.0
    %856 = vmatprep.subr.mxu0 0.0
    %857 = vmatpush1.msra.mxu0 0.0
    %858 = vmatprep.mubr.f32.mxu0 0.0
    %859 = vmatmul.mubr.f32.gmra.mrb[0].mxu0 %v792
    %v860 = vpop.f32.mrb[0].mxu0
    %v861 = vadd.f32 0.0, %v860
    %v862 = vpop.f32.mrb[0].mxu0
    %863 = vdwg.mxu0
    %v865 = vrot.slane %v861, 4
    %v867 = vadd.f32 %v153, %v865
    %v868 = vxor.u32 %v867, 2147483648
    %v869 = vmul.f32 %v868, 1.442695
    %v870 = vpow.pop %v869
    %v871 = vadd.f32 %v870, 1.0
    %v872 = vrcp.pop %v871
    %v873 = vmul.f32 1.0, %v872
    %v874 = vtanh.pop %v867
    %v876 = vrot.slane %v781, 6
    %v878 = vmul.f32 %v873, %v876
    %880 = vrot.lane.b32.xlu0 %v874, 64
    %v881 = vpop.permute.xlu0 %880
    %v883 = vmul.f32 %v873, %v881
    %885 = vrot.lane.b32.xlu0 %v883, 32
    %v886 = vpop.permute.xlu0 %885
    %v888 = vadd.f32 %v878, %v886
    %v889 = vtanh.pop %v888
    %891 = vrot.lane.b32.xlu0 %v889, 64
    %v892 = vpop.permute.xlu0 %891
    %v894 = vmul.f32 %v873, %v892
    %v896 = vrot.slane %v894, 4
    %897 = vrot.lane.b32.xlu0 %v896, 32
    %v898 = vpop.permute.xlu0 %897
    %v899 = vsel %vm61, %v898, 0
    %901 = vmatprep.subr.mxu0 0.0
    %902 = vmatpush1.msra.mxu0 %v156
    %903 = vmatprep.subr.mxu0 0.0
    %904 = vmatpush1.msra.mxu0 %v157
    %905 = vmatprep.subr.mxu0 0.0
    %906 = vmatpush1.msra.mxu0 %v158
    %907 = vmatprep.subr.mxu0 0.0
    %908 = vmatpush1.msra.mxu0 %v159
    %909 = vmatprep.subr.mxu0 0.0
    %910 = vmatpush1.msra.mxu0 0.0
    %911 = vmatprep.subr.mxu0 0.0
    %912 = vmatpush1.msra.mxu0 0.0
    %913 = vmatprep.subr.mxu0 0.0
    %914 = vmatpush1.msra.mxu0 0.0
    %915 = vmatprep.subr.mxu0 0.0
    %916 = vmatpush1.msra.mxu0 0.0
    %917 = vmatprep.subr.mxu0 0.0
    %918 = vmatpush1.msra.mxu0 0.0
    %919 = vmatprep.subr.mxu0 0.0
    %920 = vmatpush1.msra.mxu0 0.0
    %921 = vmatprep.subr.mxu0 0.0
    %922 = vmatpush1.msra.mxu0 0.0
    %923 = vmatprep.subr.mxu0 0.0
    %924 = vmatpush1.msra.mxu0 0.0
    %925 = vmatprep.subr.mxu0 0.0
    %926 = vmatpush1.msra.mxu0 0.0
    %927 = vmatprep.subr.mxu0 0.0
    %928 = vmatpush1.msra.mxu0 0.0
    %929 = vmatprep.subr.mxu0 0.0
    %930 = vmatpush1.msra.mxu0 0.0
    %931 = vmatprep.subr.mxu0 0.0
    %932 = vmatpush1.msra.mxu0 0.0
    %933 = vmatprep.subr.mxu0 0.0
    %934 = vmatpush1.msra.mxu0 0.0
    %935 = vmatprep.subr.mxu0 0.0
    %936 = vmatpush1.msra.mxu0 0.0
    %937 = vmatprep.subr.mxu0 0.0
    %938 = vmatpush1.msra.mxu0 0.0
    %939 = vmatprep.subr.mxu0 0.0
    %940 = vmatpush1.msra.mxu0 0.0
    %941 = vmatprep.subr.mxu0 0.0
    %942 = vmatpush1.msra.mxu0 0.0
    %943 = vmatprep.subr.mxu0 0.0
    %944 = vmatpush1.msra.mxu0 0.0
    %945 = vmatprep.subr.mxu0 0.0
    %946 = vmatpush1.msra.mxu0 0.0
    %947 = vmatprep.subr.mxu0 0.0
    %948 = vmatpush1.msra.mxu0 0.0
    %949 = vmatprep.subr.mxu0 0.0
    %950 = vmatpush1.msra.mxu0 0.0
    %951 = vmatprep.subr.mxu0 0.0
    %952 = vmatpush1.msra.mxu0 0.0
    %953 = vmatprep.subr.mxu0 0.0
    %954 = vmatpush1.msra.mxu0 0.0
    %955 = vmatprep.subr.mxu0 0.0
    %956 = vmatpush1.msra.mxu0 0.0
    %957 = vmatprep.subr.mxu0 0.0
    %958 = vmatpush1.msra.mxu0 0.0
    %959 = vmatprep.subr.mxu0 0.0
    %960 = vmatpush1.msra.mxu0 0.0
    %961 = vmatprep.subr.mxu0 0.0
    %962 = vmatpush1.msra.mxu0 0.0
    %963 = vmatprep.subr.mxu0 0.0
    %964 = vmatpush1.msra.mxu0 0.0
    %965 = vmatprep.mubr.f32.mxu0 0.0
    %966 = vmatmul.mubr.f32.gmra.mrb[0].mxu0 %v899
    %v967 = vpop.f32.mrb[0].mxu0
    %v968 = vadd.f32 0.0, %v967
    %v969 = vpop.f32.mrb[0].mxu0
    %970 = vdwg.mxu0
    %v972 = vrot.slane %v968, 2
    %v974 = vadd.f32 %v153, %v972
    %v975 = vxor.u32 %v974, 2147483648
    %v976 = vmul.f32 %v975, 1.442695
    %v977 = vpow.pop %v976
    %v978 = vadd.f32 %v977, 1.0
    %v979 = vrcp.pop %v978
    %v980 = vmul.f32 1.0, %v979
    %v981 = vtanh.pop %v974
    %v983 = vrot.slane %v888, 6
    %v985 = vmul.f32 %v980, %v983
    %987 = vrot.lane.b32.xlu0 %v981, 64
    %v988 = vpop.permute.xlu0 %987
    %v990 = vmul.f32 %v980, %v988
    %992 = vrot.lane.b32.xlu0 %v990, 32
    %v993 = vpop.permute.xlu0 %992
    %v995 = vadd.f32 %v985, %v993
    %v996 = vtanh.pop %v995
    %998 = vrot.lane.b32.xlu0 %v996, 64
    %v999 = vpop.permute.xlu0 %998
    %v1001 = vmul.f32 %v980, %v999
    %vm1002 = vcmask 1041408
    %v1003 = vsel %vm1002, %v257, %v363
    %vm1004 = vcmask 1043456
    %v1005 = vsel %vm1004, %v1003, %v470
    %vm1006 = vcmask 1045504
    %v1007 = vsel %vm1006, %v1005, %v577
    %v1008 = vsel %vm1002, %v681, %v787
    %v1009 = vsel %vm1004, %v1008, %v894
    %v1010 = vsel %vm1006, %v1009, %v1001
    %1013 = vrot.lane.b32.xlu0 %v1007, 64
    %v1014 = vpop.permute.xlu0 %1013
    %1015 = vrot.lane.b32.xlu0 %v1010, 64
    %v1016 = vpop.permute.xlu0 %1015
    %vm1019 = vcmask 523520
    %1020 = vst.msk [vmem:[#allocation8] sm:$0xff] %vm1019, %v1014
    %1021 = vst.msk [vmem:[#allocation8 + $0x8] sm:$0xff] %vm1019, %v1016
    // Predicated region
    $region30: #{tpu_custom_call.1} parent=1 // pred_check
      _
    $region31: #{tpu_custom_call.1} parent=1 // pred_check_branch
      %1023 = sbr.rel (0) target = $region33
    $region32: #{tpu_custom_call.1} parent=1 // pred_region
      %s1025 = ssub.s32 256, 256
      %1026 = vsyncadd [#allocation4], %s1025
      %s1027 = sshll.u32 [#allocation8], 4
      %s1028 = int_to_ptr.vmem [resolvable:$true] %s1027
      %1033 = dma.vmem_to_hbm [thread:$0]  %s1028, 256, %s4, [#allocation4], 128, 128, 8
    $region33: #{tpu_custom_call.1} parent=1 // pred_fallthru
      _
    // Predicated region
    $region34: #{tpu_custom_call.1} parent=1 // pred_check
      _
    $region35: #{tpu_custom_call.1} parent=1 // pred_check_branch
      %1035 = sbr.rel (0) target = $region37
    $region36: #{tpu_custom_call.1} parent=1 // pred_region
      %1036 = dma.done [#allocation4], 256
    $region37: #{tpu_custom_call.1} parent=1 // pred_fallthru
      _
    %1037 = vsyncpa [#allocation3], 1
    %1038 = vsyncpa [#allocation6], 1
    %1039 = vsyncpa [#allocation4], 1

</llo_original>
